<compile_context>
chip_gen: v6e
topology: v6e:2x2x1
jax: 0.10.0
libtpu: 0.0.40
codegen_flags: <defaults>
</compile_context>

<pallas_src>
import functools

import numpy as np
import jax
import jax.numpy as jnp
from jax.experimental import pallas as pl
from jax.experimental.pallas import tpu as pltpu

DROPOUT_P = 0.2
_KEEP_SCALE = 1.0 / (1.0 - DROPOUT_P)
_DROP_THRESHOLD = np.uint32(int(DROPOUT_P * (2 ** 32)))  # keep iff bits >= threshold


def _round_up(x, m):
    return (x + m - 1) // m * m


def _ffn_kernel(seed_ref, x_ref, w1_ref, b1_ref, w2_ref, b2_ref, o_ref, acc_ref, *, training):
    # x_ref: (tm, Cp) bf16, w1_ref: (Cp, th) bf16, b1_ref: (1, th) f32,
    # w2_ref: (th, Cp) bf16, b2_ref: (1, Cp) f32, acc_ref: (tm, Cp) f32 scratch.
    h_idx = pl.program_id(1)

    @pl.when(h_idx == 0)
    def _():
        acc_ref[...] = jnp.zeros_like(acc_ref)

    # First matmul over this hidden chunk: (tm, Cp) @ (Cp, th) -> fp32.
    h = jnp.dot(x_ref[...], w1_ref[...], preferred_element_type=jnp.float32)
    h = jnp.maximum(h + b1_ref[...], 0.0)  # bias + ReLU in fp32

    # Second matmul: (tm, th) @ (th, Cp), accumulated in fp32 VMEM scratch.
    acc_ref[...] += jnp.dot(h.astype(w2_ref.dtype), w2_ref[...],
                            preferred_element_type=jnp.float32)

    @pl.when(h_idx == pl.num_programs(1) - 1)
    def _():
        y = acc_ref[...] + b2_ref[...]
        if training:
            # Inverted dropout: integer threshold compare on raw PRNG bits.
            # Seed once per row tile; bits drawn once per output tile (not per H chunk).
            # TODO(synk): not bit-exact with torch's dropout RNG stream.
            pltpu.prng_seed(seed_ref[0] + pl.program_id(0))
            bits = pltpu.bitcast(pltpu.prng_random_bits(y.shape), jnp.uint32)
            keep = bits >= _DROP_THRESHOLD
            y = jnp.where(keep, y * _KEEP_SCALE, 0.0)
        o_ref[...] = y.astype(o_ref.dtype)


def feedforward(x, w1, b1, w2, b2, *, training=False, seed=0, tm=256, th=512):
    """FeedForward forward pass. x: (B, T, C) float32 -> (B, T, C)."""
    B, T, C = x.shape
    H = w1.shape[1]
    M = B * T

    # Padded / tile sizes: lane-dense (128) channel dim, MXU-friendly row & hidden tiles.
    Cp = _round_up(C, 128)
    tm = min(tm, _round_up(M, 16))
    Mp = _round_up(M, tm)
    th = min(th, _round_up(H, 128))
    Hp = _round_up(H, th)

    # bf16 MXU operands; zero padding is exact (padded rows/cols contribute nothing).
    x2d = jnp.pad(x.reshape(M, C).astype(jnp.bfloat16), ((0, Mp - M), (0, Cp - C)))
    w1p = jnp.pad(w1.astype(jnp.bfloat16), ((0, Cp - C), (0, Hp - H)))
    w2p = jnp.pad(w2.astype(jnp.bfloat16), ((0, Hp - H), (0, Cp - C)))
    b1p = jnp.pad(b1.astype(jnp.float32), (0, Hp - H)).reshape(1, Hp)
    b2p = jnp.pad(b2.astype(jnp.float32), (0, Cp - C)).reshape(1, Cp)
    seed_arr = jnp.asarray([seed], dtype=jnp.int32)

    kernel = functools.partial(_ffn_kernel, training=training)

    out2d = pl.pallas_call(
        kernel,
        out_shape=jax.ShapeDtypeStruct((Mp, Cp), x.dtype),
        grid_spec=pltpu.PrefetchScalarGridSpec(
            num_scalar_prefetch=1,
            grid=(Mp // tm, Hp // th),  # rows (parallel) first, hidden reduction last
            in_specs=[
                pl.BlockSpec((tm, Cp), lambda i, h, seed: (i, 0)),   # x row tile
                pl.BlockSpec((Cp, th), lambda i, h, seed: (0, h)),   # W1 hidden chunk
                pl.BlockSpec((1, th), lambda i, h, seed: (0, h)),    # b1 hidden chunk
                pl.BlockSpec((th, Cp), lambda i, h, seed: (h, 0)),   # W2 hidden chunk
                pl.BlockSpec((1, Cp), lambda i, h, seed: (0, 0)),    # b2
            ],
            out_specs=pl.BlockSpec((tm, Cp), lambda i, h, seed: (i, 0)),
            scratch_shapes=[pltpu.VMEM((tm, Cp), jnp.float32)],      # fp32 accumulator
        ),
        compiler_params=pltpu.CompilerParams(
            dimension_semantics=("parallel", "arbitrary"),
            vmem_limit_bytes=32 * 1024 * 1024,
        ),
    )(seed_arr, x2d, w1p, b1p, w2p, b2p)

    return out2d[:M, :C].reshape(B, T, C)


def init_params(key, n_embd):
    """Deterministic init mimicking nn.Linear defaults (uniform +/- 1/sqrt(fan_in))."""
    hidden = 4 * n_embd
    k1, k2, k3, k4 = jax.random.split(key, 4)
    lim1 = 1.0 / (n_embd ** 0.5)
    lim2 = 1.0 / (hidden ** 0.5)
    w1 = jax.random.uniform(k1, (n_embd, hidden), jnp.float32, -lim1, lim1)
    b1 = jax.random.uniform(k2, (hidden,), jnp.float32, -lim1, lim1)
    w2 = jax.random.uniform(k3, (hidden, n_embd), jnp.float32, -lim2, lim2)
    b2 = jax.random.uniform(k4, (n_embd,), jnp.float32, -lim2, lim2)
    return w1, b1, w2, b2


if __name__ == "__main__":
    key = jax.random.PRNGKey(0)
    kx, kp = jax.random.split(key)

    B, T, n_embd = 2, 8, 32
    x = jax.random.normal(kx, (B, T, n_embd), dtype=jnp.float32)
    w1, b1, w2, b2 = init_params(kp, n_embd)

    # Inference mode (dropout is identity) -> deterministic, checkable output.
    y = feedforward(x, w1, b1, w2, b2, training=False)
    y = jax.block_until_ready(y)
    assert y.shape == (B, T, n_embd)

    # Reference in plain JAX with the same bf16 MXU operands / fp32 accumulation.
    xb = x.reshape(B * T, n_embd).astype(jnp.bfloat16)
    h_ref = jnp.maximum(
        jnp.dot(xb, w1.astype(jnp.bfloat16), preferred_element_type=jnp.float32) + b1, 0.0)
    ref = (jnp.dot(h_ref.astype(jnp.bfloat16), w2.astype(jnp.bfloat16),
                   preferred_element_type=jnp.float32) + b2).reshape(B, T, n_embd)
    assert jnp.allclose(y, ref, atol=1e-2, rtol=1e-2)

    print("KERNEL_OK")
</pallas_src>

<mosaic_0001>
module attributes {stable_mosaic.version = 11 : i64} {
  func.func @_ffn_kernel(%arg0: i32, %arg1: i32, %arg2: memref<1xi32, #tpu.memory_space<smem>>, %arg3: memref<16x128xbf16, #tpu.memory_space<vmem>>, %arg4: memref<128x128xbf16, #tpu.memory_space<vmem>>, %arg5: memref<1x128xf32, #tpu.memory_space<vmem>>, %arg6: memref<128x128xbf16, #tpu.memory_space<vmem>>, %arg7: memref<1x128xf32, #tpu.memory_space<vmem>>, %arg8: memref<16x128xf32, #tpu.memory_space<vmem>>, %arg9: memref<16x128xf32, #tpu.memory_space<vmem>>) attributes {dimension_semantics = [#tpu.dimension_semantics<parallel>, #tpu.dimension_semantics<arbitrary>], iteration_bounds = array<i64: 1, 1>, scalar_prefetch = 1 : i64, scratch_operands = 1 : i64, tpu.core_type = #tpu.core_type<tc>, window_params = [{transform_indices = @transform_0, window_bounds = array<i64: 16, 128>}, {transform_indices = @transform_1, window_bounds = array<i64: 128, 128>}, {transform_indices = @transform_2, window_bounds = array<i64: 1, 128>}, {transform_indices = @transform_3, window_bounds = array<i64: 128, 128>}, {pipeline_mode = #tpu.pipeline_mode<synchronous>, transform_indices = @transform_4, window_bounds = array<i64: 1, 128>}, {transform_indices = @transform_5, window_bounds = array<i64: 16, 128>}]} {
    %c0_i32 = arith.constant 0 : i32
    %0 = arith.cmpi eq, %arg1, %c0_i32 : i32
    %1 = arith.extui %0 : i1 to i32
    %c0_i32_0 = arith.constant 0 : i32
    %2 = arith.cmpi ne, %1, %c0_i32_0 : i32
    scf.if %2 {
      %cst_16 = arith.constant 0.000000e+00 : f32
      %20 = vector.broadcast %cst_16 : f32 to vector<16x128xf32>
      %c0_17 = arith.constant 0 : index
      %c0_18 = arith.constant 0 : index
      %21 = vector.load %arg9[%c0_17, %c0_18] : memref<16x128xf32, #tpu.memory_space<vmem>>, vector<16x128xf32>
      tpu.vector_store %arg9[%c0_17, %c0_18], %20 {strides = array<i32>} : memref<16x128xf32, #tpu.memory_space<vmem>>, vector<16x128xf32>,
    } else {
    }
    %c0 = arith.constant 0 : index
    %c0_1 = arith.constant 0 : index
    %3 = vector.load %arg3[%c0, %c0_1] : memref<16x128xbf16, #tpu.memory_space<vmem>>, vector<16x128xbf16>
    %c0_2 = arith.constant 0 : index
    %c0_3 = arith.constant 0 : index
    %4 = vector.load %arg4[%c0_2, %c0_3] : memref<128x128xbf16, #tpu.memory_space<vmem>>, vector<128x128xbf16>
    %cst = arith.constant dense<0.000000e+00> : vector<16x128xf32>
    %5 = tpu.matmul %3, %4, %cst {dimension_numbers = #tpu.dot_dimension_numbers<[1], [0], [0], [1], [0, 0, 1, 1], [], []>} : vector<16x128xbf16>, vector<128x128xbf16>, vector<16x128xf32> -> vector<16x128xf32>
    %c0_4 = arith.constant 0 : index
    %c0_5 = arith.constant 0 : index
    %6 = vector.load %arg5[%c0_4, %c0_5] : memref<1x128xf32, #tpu.memory_space<vmem>>, vector<1x128xf32>
    %7 = vector.broadcast %6 : vector<1x128xf32> to vector<16x128xf32>
    %8 = arith.addf %5, %7 : vector<16x128xf32>
    %cst_6 = arith.constant 0.000000e+00 : f32
    %9 = vector.broadcast %cst_6 : f32 to vector<16x128xf32>
    %10 = arith.maximumf %8, %9 : vector<16x128xf32>
    %c0_7 = arith.constant 0 : index
    %c0_8 = arith.constant 0 : index
    %11 = vector.load %arg9[%c0_7, %c0_8] : memref<16x128xf32, #tpu.memory_space<vmem>>, vector<16x128xf32>
    %12 = arith.truncf %10 : vector<16x128xf32> to vector<16x128xbf16>
    %c0_9 = arith.constant 0 : index
    %c0_10 = arith.constant 0 : index
    %13 = vector.load %arg6[%c0_9, %c0_10] : memref<128x128xbf16, #tpu.memory_space<vmem>>, vector<128x128xbf16>
    %cst_11 = arith.constant dense<0.000000e+00> : vector<16x128xf32>
    %14 = tpu.matmul %12, %13, %cst_11 {dimension_numbers = #tpu.dot_dimension_numbers<[1], [0], [0], [1], [0, 0, 1, 1], [], []>} : vector<16x128xbf16>, vector<128x128xbf16>, vector<16x128xf32> -> vector<16x128xf32>
    %15 = arith.addf %11, %14 : vector<16x128xf32>
    %c0_12 = arith.constant 0 : index
    %c0_13 = arith.constant 0 : index
    %16 = vector.load %arg9[%c0_12, %c0_13] : memref<16x128xf32, #tpu.memory_space<vmem>>, vector<16x128xf32>
    tpu.vector_store %arg9[%c0_12, %c0_13], %15 {strides = array<i32>} : memref<16x128xf32, #tpu.memory_space<vmem>>, vector<16x128xf32>,
    %c0_i32_14 = arith.constant 0 : i32
    %17 = arith.cmpi eq, %arg1, %c0_i32_14 : i32
    %18 = arith.extui %17 : i1 to i32
    %c0_i32_15 = arith.constant 0 : i32
    %19 = arith.cmpi ne, %18, %c0_i32_15 : i32
    scf.if %19 {
      %c0_16 = arith.constant 0 : index
      %c0_17 = arith.constant 0 : index
      %20 = vector.load %arg9[%c0_16, %c0_17] : memref<16x128xf32, #tpu.memory_space<vmem>>, vector<16x128xf32>
      %c0_18 = arith.constant 0 : index
      %c0_19 = arith.constant 0 : index
      %21 = vector.load %arg7[%c0_18, %c0_19] : memref<1x128xf32, #tpu.memory_space<vmem>>, vector<1x128xf32>
      %22 = vector.broadcast %21 : vector<1x128xf32> to vector<16x128xf32>
      %23 = arith.addf %20, %22 : vector<16x128xf32>
      %c0_20 = arith.constant 0 : index
      %c0_21 = arith.constant 0 : index
      %24 = vector.load %arg8[%c0_20, %c0_21] : memref<16x128xf32, #tpu.memory_space<vmem>>, vector<16x128xf32>
      tpu.vector_store %arg8[%c0_20, %c0_21], %23 {strides = array<i32>} : memref<16x128xf32, #tpu.memory_space<vmem>>, vector<16x128xf32>,
    } else {
    }
    return
  }
  func.func @transform_0(%arg0: i32, %arg1: i32, %arg2: memref<1xi32, #tpu.memory_space<smem>>) -> (i32, i32) {
    %c0_i32 = arith.constant 0 : i32
    %c0_i32_0 = arith.constant 0 : i32
    return %arg0, %c0_i32 : i32, i32
  }
  func.func @transform_1(%arg0: i32, %arg1: i32, %arg2: memref<1xi32, #tpu.memory_space<smem>>) -> (i32, i32) {
    %c0_i32 = arith.constant 0 : i32
    %c0_i32_0 = arith.constant 0 : i32
    return %c0_i32, %arg1 : i32, i32
  }
  func.func @transform_2(%arg0: i32, %arg1: i32, %arg2: memref<1xi32, #tpu.memory_space<smem>>) -> (i32, i32) {
    %c0_i32 = arith.constant 0 : i32
    %c0_i32_0 = arith.constant 0 : i32
    return %c0_i32, %arg1 : i32, i32
  }
  func.func @transform_3(%arg0: i32, %arg1: i32, %arg2: memref<1xi32, #tpu.memory_space<smem>>) -> (i32, i32) {
    %c0_i32 = arith.constant 0 : i32
    %c0_i32_0 = arith.constant 0 : i32
    return %arg1, %c0_i32 : i32, i32
  }
  func.func @transform_4(%arg0: i32, %arg1: i32, %arg2: memref<1xi32, #tpu.memory_space<smem>>) -> (i32, i32) {
    %c0_i32 = arith.constant 0 : i32
    %c0_i32_0 = arith.constant 0 : i32
    %c0_i32_1 = arith.constant 0 : i32
    return %c0_i32, %c0_i32_0 : i32, i32
  }
  func.func @transform_5(%arg0: i32, %arg1: i32, %arg2: memref<1xi32, #tpu.memory_space<smem>>) -> (i32, i32) {
    %c0_i32 = arith.constant 0 : i32
    %c0_i32_0 = arith.constant 0 : i32
    return %arg0, %c0_i32 : i32, i32
  }
}

</mosaic_0001>

<llo_original>
// kernel: tpu_custom_call.1
$region0: #{tpu_custom_call.1}
  #allocation0 [shape = 'u32[]', space=smem, size = 0x4, offset = 0x4, fixed_abs, tag = 'smem constant byte address 0x4 - core index']
  #allocation1 [shape = 'u32[144,128]{1,0:T(1,128)}', space=vmem, size = 0x12000, scoped, tag = 'internal scratch']
  #allocation2 [shape = 'f32[16,128]{1,0:T(8,128)}', space=vmem, size = 0x2000, scoped, tag = 'scratch operand']
  #allocation3 [shape = 's32[1]{0}', space=sflag, size = 0x4, scoped, tag = 'scoped memory for tpu_custom_call.1']
  #allocation4 [shape = 's32[1]{0:T(128)S(6)}', space=smem, size = 0x200, scoped, tag = 'prefetched SMEM operand 0']
  %s0 = inlined_call_operand.<no memory space> [shape: s32[1], index: 0, kind: input, shape index: {}]
  %s1 = inlined_call_operand.hbm [shape: bf16[16,128], index: 1, kind: input, shape index: {}]
  %s2 = inlined_call_operand.hbm [shape: bf16[128,128], index: 2, kind: input, shape index: {}]
  %s3 = inlined_call_operand.vmem [shape: f32[1,128], index: 3, kind: input, shape index: {}]
  %s4 = inlined_call_operand.hbm [shape: bf16[128,128], index: 4, kind: input, shape index: {}]
  %s5 = inlined_call_operand.vmem [shape: f32[1,128], index: 5, kind: input, shape index: {}]
  %s6 = inlined_call_operand.hbm [shape: f32[16,128], index: 6, kind: output, shape index: {}]
  %s7 = sld [smem:[#allocation0]]
  $region50: #{tpu_custom_call.1} parent=0
    _
  %s9 = ssub.s32 1, %s7
  %s10 = scalar_select 0, %s9, %s7
  %11 = sst [smem:[#allocation4]] %s0
  $region1: #{tpu_custom_call.1} parent=0
    #allocation5 [shape = 'u8[4096]{0}', space=vmem, size = 0x1000, scoped, tag = 'input window, operand 1, single buffered']
    #allocation6 [shape = 's32[1]{0}', space=sflag, size = 0x4, scoped, tag = 'scoped memory for tpu_custom_call.1']
    #allocation7 [shape = 's32[1]{0}', space=sflag, size = 0x4, scoped, tag = 'scoped memory for tpu_custom_call.1']
    #allocation8 [shape = 'u8[32768]{0}', space=vmem, size = 0x8000, scoped, tag = 'input window, operand 2, single buffered']
    #allocation9 [shape = 's32[1]{0}', space=sflag, size = 0x4, scoped, tag = 'scoped memory for tpu_custom_call.1']
    #allocation10 [shape = 'u8[32768]{0}', space=vmem, size = 0x8000, scoped, tag = 'input window, operand 4, single buffered']
    #allocation11 [shape = 'u8[8192]{0}', space=vmem, size = 0x2000, scoped, tag = 'output window, operand 0, single buffered']
    %12 = vsyncpa [#allocation6], 0
    %13 = vsyncpa [#allocation9], 0
    %14 = vsyncpa [#allocation7], 0
    // Predicated region
    $region2: #{tpu_custom_call.1} parent=1 // pred_check
      _
    $region3: #{tpu_custom_call.1} parent=1 // pred_check_branch
      %16 = sbr.rel (0) target = $region5
    $region4: #{tpu_custom_call.1} parent=1 // pred_region
      %s18 = ssub.s32 128, 128
      %19 = vsyncadd [#allocation6], %s18
      %s20 = sshll.u32 [#allocation5], 4
      %s21 = int_to_ptr.vmem [resolvable:$true] %s20
      %26 = dma.hbm_to_vmem [thread:$0]  %s1, 128, %s21, [#allocation6], 64, 64, 4
    $region5: #{tpu_custom_call.1} parent=1 // pred_fallthru
      _
    // Predicated region
    $region6: #{tpu_custom_call.1} parent=1 // pred_check
      _
    $region7: #{tpu_custom_call.1} parent=1 // pred_check_branch
      %28 = sbr.rel (0) target = $region9
    $region8: #{tpu_custom_call.1} parent=1 // pred_region
      %s30 = ssub.s32 1024, 1024
      %31 = vsyncadd [#allocation9], %s30
      %s32 = sshll.u32 [#allocation8], 4
      %s33 = int_to_ptr.vmem [resolvable:$true] %s32
      %38 = dma.hbm_to_vmem [thread:$0]  %s2, 1024, %s33, [#allocation9], 64, 64, 4
    $region9: #{tpu_custom_call.1} parent=1 // pred_fallthru
      _
    // Predicated region
    $region10: #{tpu_custom_call.1} parent=1 // pred_check
      _
    $region11: #{tpu_custom_call.1} parent=1 // pred_check_branch
      %40 = sbr.rel (0) target = $region13
    $region12: #{tpu_custom_call.1} parent=1 // pred_region
      _
    $region13: #{tpu_custom_call.1} parent=1 // pred_fallthru
      _
    // Predicated region
    $region14: #{tpu_custom_call.1} parent=1 // pred_check
      _
    $region15: #{tpu_custom_call.1} parent=1 // pred_check_branch
      %42 = sbr.rel (0) target = $region17
    $region16: #{tpu_custom_call.1} parent=1 // pred_region
      %s44 = ssub.s32 1024, 1024
      %45 = vsyncadd [#allocation9], %s44
      %s46 = sshll.u32 [#allocation10], 4
      %s47 = int_to_ptr.vmem [resolvable:$true] %s46
      %52 = dma.hbm_to_vmem [thread:$0]  %s4, 1024, %s47, [#allocation9], 64, 64, 4
    $region17: #{tpu_custom_call.1} parent=1 // pred_fallthru
      _
    // Predicated region
    $region18: #{tpu_custom_call.1} parent=1 // pred_check
      _
    $region19: #{tpu_custom_call.1} parent=1 // pred_check_branch
      %54 = sbr.rel (0) target = $region21
    $region20: #{tpu_custom_call.1} parent=1 // pred_region
      _
    $region21: #{tpu_custom_call.1} parent=1 // pred_fallthru
      _
    // Predicated region
    $region22: #{tpu_custom_call.1} parent=1 // pred_check
      _
    $region23: #{tpu_custom_call.1} parent=1 // pred_check_branch
      %56 = sbr.rel (0) target = $region25
    $region24: #{tpu_custom_call.1} parent=1 // pred_region
      %57 = dma.done [#allocation6], 128
    $region25: #{tpu_custom_call.1} parent=1 // pred_fallthru
      _
    // Predicated region
    $region26: #{tpu_custom_call.1} parent=1 // pred_check
      _
    $region27: #{tpu_custom_call.1} parent=1 // pred_check_branch
      %59 = sbr.rel (0) target = $region29
    $region28: #{tpu_custom_call.1} parent=1 // pred_region
      %60 = dma.done [#allocation9], 1024
    $region29: #{tpu_custom_call.1} parent=1 // pred_fallthru
      _
    // Predicated region
    $region30: #{tpu_custom_call.1} parent=1 // pred_check
      _
    $region31: #{tpu_custom_call.1} parent=1 // pred_check_branch
      %62 = sbr.rel (0) target = $region33
    $region32: #{tpu_custom_call.1} parent=1 // pred_region
      %63 = dma.done [#allocation9], 1024
    $region33: #{tpu_custom_call.1} parent=1 // pred_fallthru
      _
    %p65 = scmp.eq.s32.totalorder 0, 0
    // Predicated region
    $region34: #{tpu_custom_call.1} parent=1 // pred_check
      %p66 = pneg %p65
    $region35: #{tpu_custom_call.1} parent=1 // pred_check_branch
      %68 = sbr.rel (%p66) target = $region37
    $region36: #{tpu_custom_call.1} parent=1 // pred_region
      %69 = vst [vmem:[#allocation2] sm:$0xff] 0.0
      %70 = vst [vmem:[#allocation2 + $0x8] sm:$0xff] 0.0
    $region37: #{tpu_custom_call.1} parent=1 // pred_fallthru
      _
    %v71 = vld [vmem:[#allocation5] sm:$0xf]
    %v72 = vld [vmem:[#allocation5 + $0x4] sm:$0xf]
    %v73 = vld [vmem:[#allocation8] sm:$0xf]
    %v74 = vld [vmem:[#allocation8 + $0x4] sm:$0xf]
    %v75 = vld [vmem:[#allocation8 + $0x8] sm:$0xf]
    %v76 = vld [vmem:[#allocation8 + $0xc] sm:$0xf]
    %v77 = vld [vmem:[#allocation8 + $0x10] sm:$0xf]
    %v78 = vld [vmem:[#allocation8 + $0x14] sm:$0xf]
    %v79 = vld [vmem:[#allocation8 + $0x18] sm:$0xf]
    %v80 = vld [vmem:[#allocation8 + $0x1c] sm:$0xf]
    %v81 = vld [vmem:[#allocation8 + $0x20] sm:$0xf]
    %v82 = vld [vmem:[#allocation8 + $0x24] sm:$0xf]
    %v83 = vld [vmem:[#allocation8 + $0x28] sm:$0xf]
    %v84 = vld [vmem:[#allocation8 + $0x2c] sm:$0xf]
    %v85 = vld [vmem:[#allocation8 + $0x30] sm:$0xf]
    %v86 = vld [vmem:[#allocation8 + $0x34] sm:$0xf]
    %v87 = vld [vmem:[#allocation8 + $0x38] sm:$0xf]
    %v88 = vld [vmem:[#allocation8 + $0x3c] sm:$0xf]
    %v89 = vld [vmem:[%s3] sm:$0x1]
    %v91 = vlaneseq
    %v92 = vshrl.u32 %v91, 7
    %v93 = vsub.s32 0, %v92
    %v94 = vrot.slane %v89, %v93
    %v98 = vunpack.c.l.b16 %v71
    %v99 = vunpack.c.l.b16 %v72
    %v100 = vpack.c.b16 %v99, %v98
    %v118 = vunpack.c.l.b16 %v73
    %v119 = vunpack.c.l.b16 %v74
    %v120 = vunpack.c.l.b16 %v75
    %v121 = vunpack.c.l.b16 %v76
    %v122 = vunpack.c.l.b16 %v77
    %v123 = vunpack.c.l.b16 %v78
    %v124 = vunpack.c.l.b16 %v79
    %v125 = vunpack.c.l.b16 %v80
    %v126 = vunpack.c.l.b16 %v81
    %v127 = vunpack.c.l.b16 %v82
    %v128 = vunpack.c.l.b16 %v83
    %v129 = vunpack.c.l.b16 %v84
    %v130 = vunpack.c.l.b16 %v85
    %v131 = vunpack.c.l.b16 %v86
    %v132 = vunpack.c.l.b16 %v87
    %v133 = vunpack.c.l.b16 %v88
    %v134 = vpack.c.b16 %v119, %v118
    %v135 = vpack.c.b16 %v121, %v120
    %v136 = vpack.c.b16 %v123, %v122
    %v137 = vpack.c.b16 %v125, %v124
    %v138 = vpack.c.b16 %v127, %v126
    %v139 = vpack.c.b16 %v129, %v128
    %v140 = vpack.c.b16 %v131, %v130
    %v141 = vpack.c.b16 %v133, %v132
    %150 = vmatprep.subr.bf16.mxu0 0
    %151 = vmatpush1.bf16.msra.mxu0 %v141
    %152 = vmatprep.subr.bf16.mxu0 0
    %153 = vmatpush1.bf16.msra.mxu0 %v140
    %154 = vmatprep.subr.bf16.mxu0 0
    %155 = vmatpush1.bf16.msra.mxu0 %v139
    %156 = vmatprep.subr.bf16.mxu0 0
    %157 = vmatpush1.bf16.msra.mxu0 %v138
    %158 = vmatprep.subr.bf16.mxu0 0
    %159 = vmatpush1.bf16.msra.mxu0 %v137
    %160 = vmatprep.subr.bf16.mxu0 0
    %161 = vmatpush1.bf16.msra.mxu0 %v136
    %162 = vmatprep.subr.bf16.mxu0 0
    %163 = vmatpush1.bf16.msra.mxu0 %v135
    %164 = vmatprep.subr.bf16.mxu0 0
    %165 = vmatpush1.bf16.msra.mxu0 %v134
    %166 = vmatprep.subr.bf16.mxu0 0
    %167 = vmatpush2.bf16.msra.mxu0 0
    %168 = vmatprep.subr.bf16.mxu0 0
    %169 = vmatpush2.bf16.msra.mxu0 0
    %170 = vmatprep.subr.bf16.mxu0 0
    %171 = vmatpush2.bf16.msra.mxu0 0
    %172 = vmatprep.subr.bf16.mxu0 0
    %173 = vmatpush2.bf16.msra.mxu0 0
    %174 = vmatprep.subr.bf16.mxu0 0
    %175 = vmatpush2.bf16.msra.mxu0 0
    %176 = vmatprep.subr.bf16.mxu0 0
    %177 = vmatpush2.bf16.msra.mxu0 0
    %178 = vmatprep.subr.bf16.mxu0 0
    %179 = vmatpush2.bf16.msra.mxu0 0
    %180 = vmatprep.subr.bf16.mxu0 0
    %181 = vmatpush2.bf16.msra.mxu0 0
    %182 = vmatprep.mubr.bf16.mxu0 0
    %183 = vmatmul.mubr.bf16.gmra.mxu0 %v100
    %v184 = vpop.f32.mrf.mxu0
    %v185 = vadd.f32 %v94, %v184
    %v186 = vpop.f32.mrf.mxu0
    %v187 = vpop.f32.mrf.mxu0
    %v188 = vadd.f32 %v94, %v187
    %v189 = vpop.f32.mrf.mxu0
    %190 = vdwg.mxu0
    %v191 = vmax.f32 %v185, 0.0
    %v192 = vmax.f32 %v188, 0.0
    %v193 = vld [vmem:[#allocation2] sm:$0xff]
    %v194 = vld [vmem:[#allocation2 + $0x8] sm:$0xff]
    %v195 = vpack.c.bf16 %v192, %v191
    %v196 = vld [vmem:[#allocation10] sm:$0xf]
    %v197 = vld [vmem:[#allocation10 + $0x4] sm:$0xf]
    %v198 = vld [vmem:[#allocation10 + $0x8] sm:$0xf]
    %v199 = vld [vmem:[#allocation10 + $0xc] sm:$0xf]
    %v200 = vld [vmem:[#allocation10 + $0x10] sm:$0xf]
    %v201 = vld [vmem:[#allocation10 + $0x14] sm:$0xf]
    %v202 = vld [vmem:[#allocation10 + $0x18] sm:$0xf]
    %v203 = vld [vmem:[#allocation10 + $0x1c] sm:$0xf]
    %v204 = vld [vmem:[#allocation10 + $0x20] sm:$0xf]
    %v205 = vld [vmem:[#allocation10 + $0x24] sm:$0xf]
    %v206 = vld [vmem:[#allocation10 + $0x28] sm:$0xf]
    %v207 = vld [vmem:[#allocation10 + $0x2c] sm:$0xf]
    %v208 = vld [vmem:[#allocation10 + $0x30] sm:$0xf]
    %v209 = vld [vmem:[#allocation10 + $0x34] sm:$0xf]
    %v210 = vld [vmem:[#allocation10 + $0x38] sm:$0xf]
    %v211 = vld [vmem:[#allocation10 + $0x3c] sm:$0xf]
    %v228 = vunpack.c.l.b16 %v196
    %v229 = vunpack.c.l.b16 %v197
    %v230 = vunpack.c.l.b16 %v198
    %v231 = vunpack.c.l.b16 %v199
    %v232 = vunpack.c.l.b16 %v200
    %v233 = vunpack.c.l.b16 %v201
    %v234 = vunpack.c.l.b16 %v202
    %v235 = vunpack.c.l.b16 %v203
    %v236 = vunpack.c.l.b16 %v204
    %v237 = vunpack.c.l.b16 %v205
    %v238 = vunpack.c.l.b16 %v206
    %v239 = vunpack.c.l.b16 %v207
    %v240 = vunpack.c.l.b16 %v208
    %v241 = vunpack.c.l.b16 %v209
    %v242 = vunpack.c.l.b16 %v210
    %v243 = vunpack.c.l.b16 %v211
    %v244 = vpack.c.b16 %v229, %v228
    %v245 = vpack.c.b16 %v231, %v230
    %v246 = vpack.c.b16 %v233, %v232
    %v247 = vpack.c.b16 %v235, %v234
    %v248 = vpack.c.b16 %v237, %v236
    %v249 = vpack.c.b16 %v239, %v238
    %v250 = vpack.c.b16 %v241, %v240
    %v251 = vpack.c.b16 %v243, %v242
    %260 = vmatprep.subr.bf16.mxu0 0
    %261 = vmatpush1.bf16.msra.mxu0 %v251
    %262 = vmatprep.subr.bf16.mxu0 0
    %263 = vmatpush1.bf16.msra.mxu0 %v250
    %264 = vmatprep.subr.bf16.mxu0 0
    %265 = vmatpush1.bf16.msra.mxu0 %v249
    %266 = vmatprep.subr.bf16.mxu0 0
    %267 = vmatpush1.bf16.msra.mxu0 %v248
    %268 = vmatprep.subr.bf16.mxu0 0
    %269 = vmatpush1.bf16.msra.mxu0 %v247
    %270 = vmatprep.subr.bf16.mxu0 0
    %271 = vmatpush1.bf16.msra.mxu0 %v246
    %272 = vmatprep.subr.bf16.mxu0 0
    %273 = vmatpush1.bf16.msra.mxu0 %v245
    %274 = vmatprep.subr.bf16.mxu0 0
    %275 = vmatpush1.bf16.msra.mxu0 %v244
    %276 = vmatprep.subr.bf16.mxu0 0
    %277 = vmatpush2.bf16.msra.mxu0 0
    %278 = vmatprep.subr.bf16.mxu0 0
    %279 = vmatpush2.bf16.msra.mxu0 0
    %280 = vmatprep.subr.bf16.mxu0 0
    %281 = vmatpush2.bf16.msra.mxu0 0
    %282 = vmatprep.subr.bf16.mxu0 0
    %283 = vmatpush2.bf16.msra.mxu0 0
    %284 = vmatprep.subr.bf16.mxu0 0
    %285 = vmatpush2.bf16.msra.mxu0 0
    %286 = vmatprep.subr.bf16.mxu0 0
    %287 = vmatpush2.bf16.msra.mxu0 0
    %288 = vmatprep.subr.bf16.mxu0 0
    %289 = vmatpush2.bf16.msra.mxu0 0
    %290 = vmatprep.subr.bf16.mxu0 0
    %291 = vmatpush2.bf16.msra.mxu0 0
    %292 = vmatprep.mubr.bf16.mxu0 0
    %293 = vmatmul.mubr.bf16.gmra.mxu0 %v195
    %v294 = vpop.f32.mrf.mxu0
    %v295 = vadd.f32 0.0, %v294
    %v296 = vpop.f32.mrf.mxu0
    %v297 = vpop.f32.mrf.mxu0
    %v298 = vadd.f32 0.0, %v297
    %v299 = vpop.f32.mrf.mxu0
    %300 = vdwg.mxu0
    %v301 = vadd.f32 %v193, %v295
    %v302 = vadd.f32 %v194, %v298
    %303 = vst [vmem:[#allocation2] sm:$0xff] %v301
    %304 = vst [vmem:[#allocation2 + $0x8] sm:$0xff] %v302
    // Predicated region
    $region38: #{tpu_custom_call.1} parent=1 // pred_check
      %p305 = pneg %p65
    $region39: #{tpu_custom_call.1} parent=1 // pred_check_branch
      %307 = sbr.rel (%p305) target = $region41
    $region40: #{tpu_custom_call.1} parent=1 // pred_region
      %v308 = vld [vmem:[#allocation2] sm:$0xff]
      %v309 = vld [vmem:[#allocation2 + $0x8] sm:$0xff]
      %v310 = vld [vmem:[%s5] sm:$0x1]
      %v312 = vlaneseq
      %v313 = vshrl.u32 %v312, 7
      %v314 = vsub.s32 0, %v313
      %v315 = vrot.slane %v310, %v314
      %v317 = vadd.f32 %v308, %v315
      %v318 = vadd.f32 %v309, %v315
      %319 = vst [vmem:[#allocation11] sm:$0xff] %v317
      %320 = vst [vmem:[#allocation11 + $0x8] sm:$0xff] %v318
    $region41: #{tpu_custom_call.1} parent=1 // pred_fallthru
      _
    // Predicated region
    $region42: #{tpu_custom_call.1} parent=1 // pred_check
      _
    $region43: #{tpu_custom_call.1} parent=1 // pred_check_branch
      %322 = sbr.rel (0) target = $region45
    $region44: #{tpu_custom_call.1} parent=1 // pred_region
      %s324 = ssub.s32 256, 256
      %325 = vsyncadd [#allocation7], %s324
      %s326 = sshll.u32 [#allocation11], 4
      %s327 = int_to_ptr.vmem [resolvable:$true] %s326
      %332 = dma.vmem_to_hbm [thread:$0]  %s327, 256, %s6, [#allocation7], 128, 128, 8
    $region45: #{tpu_custom_call.1} parent=1 // pred_fallthru
      _
    // Predicated region
    $region46: #{tpu_custom_call.1} parent=1 // pred_check
      _
    $region47: #{tpu_custom_call.1} parent=1 // pred_check_branch
      %334 = sbr.rel (0) target = $region49
    $region48: #{tpu_custom_call.1} parent=1 // pred_region
      %335 = dma.done [#allocation7], 256
    $region49: #{tpu_custom_call.1} parent=1 // pred_fallthru
      _
    %336 = vsyncpa [#allocation6], 1
    %337 = vsyncpa [#allocation9], 1
    %338 = vsyncpa [#allocation7], 1

</llo_original>
